<compile_context>
chip_gen: v7x
topology: tpu7x:2x2x1
jax: 0.10.0
libtpu: 0.0.40
codegen_flags: <defaults>
</compile_context>

<pallas_src>
import functools
import math

import jax
import jax.numpy as jnp
from jax import lax
from jax.experimental import pallas as pl
from jax.experimental.pallas import tpu as pltpu


# ---------------------------------------------------------------------------
# Phase 1: Gram-block / cluster-mass accumulation over the batch axis.
# ---------------------------------------------------------------------------
def _accum_kernel(ci_ref, cj_ref,
                  gii_ref, gij_ref, gji_ref, gjj_ref, si_ref, sj_ref,
                  *, batch, block_rows, tiles_per_split, needs_mask):
    s = pl.program_id(0)          # TensorCore split (parallel)
    t = pl.program_id(1)          # batch tile within the split (arbitrary)

    @pl.when(t == 0)
    def _init():
        gii_ref[...] = jnp.zeros_like(gii_ref)
        gij_ref[...] = jnp.zeros_like(gij_ref)
        gji_ref[...] = jnp.zeros_like(gji_ref)
        gjj_ref[...] = jnp.zeros_like(gjj_ref)
        si_ref[...] = jnp.zeros_like(si_ref)
        sj_ref[...] = jnp.zeros_like(sj_ref)

    ci = ci_ref[...]
    cj = cj_ref[...]
    if needs_mask:
        # Rows past the end of the batch (ragged last tile or an
        # over-provisioned split) are zeroed so they contribute nothing.
        row0 = (s * tiles_per_split + t) * block_rows
        ridx = lax.broadcasted_iota(jnp.int32, ci.shape, 0)
        valid = ridx < (batch - row0)
        ci = jnp.where(valid, ci, 0.0)
        cj = jnp.where(valid, cj, 0.0)

    # Contract over the batch (sublane) axis: G_xy = x^T @ y, shape (K, K).
    dn = (((0,), (0,)), ((), ()))
    gii_ref[...] += lax.dot_general(ci, ci, dn, preferred_element_type=jnp.float32)
    gij_ref[...] += lax.dot_general(ci, cj, dn, preferred_element_type=jnp.float32)
    gji_ref[...] += lax.dot_general(cj, ci, dn, preferred_element_type=jnp.float32)
    gjj_ref[...] += lax.dot_general(cj, cj, dn, preferred_element_type=jnp.float32)
    # Per-cluster mass == column sums of the (B, K) inputs.
    si_ref[...] += jnp.sum(ci, axis=0, keepdims=True).astype(jnp.float32)
    sj_ref[...] += jnp.sum(cj, axis=0, keepdims=True).astype(jnp.float32)


# ---------------------------------------------------------------------------
# Phase 2: one-shot finalize (cosine sim, masked CE, entropy regularizer).
# ---------------------------------------------------------------------------
def _finalize_kernel(gii_ref, gij_ref, gji_ref, gjj_ref, si_ref, sj_ref,
                     out_ref, *, class_num, temperature):
    K = class_num
    N = 2 * K
    eps2 = jnp.float32(1e-8 * 1e-8)
    inv_t = jnp.float32(1.0 / temperature)
    neg_big = jnp.float32(-1e30)

    # Reduce the per-TensorCore partial accumulators.
    gii = jnp.sum(gii_ref[...], axis=0)            # (K, K)
    gij = jnp.sum(gij_ref[...], axis=0)
    gji = jnp.sum(gji_ref[...], axis=0)
    gjj = jnp.sum(gjj_ref[...], axis=0)
    si = jnp.sum(si_ref[...], axis=0)              # (1, K)
    sj = jnp.sum(sj_ref[...], axis=0)

    # ---- entropy regularizer (ne_loss) ----
    p_i = si / jnp.sum(si)
    p_j = sj / jnp.sum(sj)
    ne_i = math.log(K) + jnp.sum(p_i * jnp.log(p_i))
    ne_j = math.log(K) + jnp.sum(p_j * jnp.log(p_j))

    # ---- cosine similarity recovered from the Gram blocks ----
    row = lax.broadcasted_iota(jnp.int32, (K, K), 0)
    col = lax.broadcasted_iota(jnp.int32, (K, K), 1)
    diag = row == col

    # Squared norms live on the diagonals of Gii / Gjj; extract once as a
    # column (lane reduce) and once as a row (sublane reduce).
    dii_c = jnp.sum(jnp.where(diag, gii, 0.0), axis=1, keepdims=True)   # (K, 1)
    dii_r = jnp.sum(jnp.where(diag, gii, 0.0), axis=0, keepdims=True)   # (1, K)
    djj_c = jnp.sum(jnp.where(diag, gjj, 0.0), axis=1, keepdims=True)
    djj_r = jnp.sum(jnp.where(diag, gjj, 0.0), axis=0, keepdims=True)
    inv_i_c = lax.rsqrt(jnp.maximum(dii_c, eps2))   # == 1 / max(||c_i||, eps)
    inv_i_r = lax.rsqrt(jnp.maximum(dii_r, eps2))
    inv_j_c = lax.rsqrt(jnp.maximum(djj_c, eps2))
    inv_j_r = lax.rsqrt(jnp.maximum(djj_r, eps2))

    sim_ii = gii * inv_i_c * inv_i_r * inv_t
    sim_ij = gij * inv_i_c * inv_j_r * inv_t
    sim_ji = gji * inv_j_c * inv_i_r * inv_t
    sim_jj = gjj * inv_j_c * inv_j_r * inv_t

    # CrossEntropy(reduction='sum'), positive pair as label:
    #   row r < K :  lse over {sim_ii[r, k!=r]} u {sim_ij[r, :]}  -  sim_ij[r, r]
    #   row K + r :  lse over {sim_ji[r, :]} u {sim_jj[r, k!=r]}  -  sim_ji[r, r]
    m_ii = jnp.where(diag, neg_big, sim_ii)
    m_jj = jnp.where(diag, neg_big, sim_jj)

    def half_ce(own_masked, cross, pos_block):
        m = jnp.maximum(jnp.max(own_masked, axis=1, keepdims=True),
                        jnp.max(cross, axis=1, keepdims=True))
        z = (jnp.sum(jnp.exp(own_masked - m), axis=1, keepdims=True) +
             jnp.sum(jnp.exp(cross - m), axis=1, keepdims=True))
        lse = m + jnp.log(z)
        pos = jnp.sum(jnp.where(diag, pos_block, 0.0), axis=1, keepdims=True)
        return jnp.sum(lse - pos)

    ce = (half_ce(m_ii, sim_ij, sim_ij) + half_ce(m_jj, sim_ji, sim_ji)) / N

    out_ref[0, 0] = (ce + ne_i + ne_j).astype(jnp.float32)


# ---------------------------------------------------------------------------
# Wrapper
# ---------------------------------------------------------------------------
def _vmem_capacity_bytes():
    try:
        cap = int(pltpu.get_tpu_info().vmem_capacity_bytes)
        if cap > 0:
            return cap
    except Exception:
        pass
    return 64 * 1024 * 1024          # conservative (v7x-sized) fallback


def _pick_block_rows(class_num, itemsize, vmem_cap):
    """Largest batch tile such that double-buffered c_i/c_j tiles (+ resident
    accumulators) stay well inside the per-generation VMEM budget."""
    lane_k = ((class_num + 127) // 128) * 128            # lane-padded width
    sub_k = ((class_num + 7) // 8) * 8
    acc_bytes = 2 * (4 * sub_k + 2 * 8) * lane_k * 4     # resident f32 accumulators
    budget = max(int(vmem_cap * 0.45) - acc_bytes, 1 << 20)
    per_row = 2 * 2 * lane_k * max(int(itemsize), 1)     # 2 inputs x double-buffer
    tb = (budget // per_row // 512) * 512
    return int(min(max(tb, 512), 1 << 16))


def cluster_loss(c_i, c_j, class_num, temperature, *, block_rows=None, num_splits=2):
    B, K = c_i.shape
    assert K == class_num and c_j.shape == (B, K)

    vmem_cap = _vmem_capacity_bytes()
    itemsize = jnp.dtype(c_i.dtype).itemsize
    if block_rows is None:
        block_rows = _pick_block_rows(K, itemsize, vmem_cap)

    if block_rows >= B:
        tb, nb = B, 1                                    # single tile == full batch
    else:
        tb = max((int(block_rows) // 8) * 8, 8)          # sublane-aligned tile rows
        nb = pl.cdiv(B, tb)
    S = max(1, min(int(num_splits), nb))                 # TensorCore splits (v7x: 2)
    T = pl.cdiv(nb, S)                                   # batch tiles per split
    needs_mask = (S * T * tb != B)

    def row_map(s, t):       # clamp over-provisioned splits to a valid block
        return (jnp.minimum(s * T + t, nb - 1), 0)

    def part_map(s, t):
        return (s, 0, 0)

    accum = functools.partial(
        _accum_kernel, batch=B, block_rows=tb, tiles_per_split=T,
        needs_mask=needs_mask)

    cost = pl.CostEstimate(
        flops=8 * K * K * B + 4 * B * K,
        transcendentals=0,
        bytes_accessed=2 * B * K * int(itemsize) + S * (4 * K * K + 2 * K) * 4)

    gram_sd = jax.ShapeDtypeStruct((S, K, K), jnp.float32)
    mass_sd = jax.ShapeDtypeStruct((S, 1, K), jnp.float32)

    gii, gij, gji, gjj, si, sj = pl.pallas_call(
        accum,
        grid=(S, T),
        in_specs=[pl.BlockSpec((tb, K), row_map),
                  pl.BlockSpec((tb, K), row_map)],
        out_specs=[pl.BlockSpec((None, K, K), part_map),
                   pl.BlockSpec((None, K, K), part_map),
                   pl.BlockSpec((None, K, K), part_map),
                   pl.BlockSpec((None, K, K), part_map),
                   pl.BlockSpec((None, 1, K), part_map),
                   pl.BlockSpec((None, 1, K), part_map)],
        out_shape=[gram_sd, gram_sd, gram_sd, gram_sd, mass_sd, mass_sd],
        compiler_params=pltpu.CompilerParams(
            dimension_semantics=("parallel", "arbitrary"),
            vmem_limit_bytes=int(min(vmem_cap * 0.85, 100 * 1024 * 1024))),
        cost_estimate=cost,
    )(c_i, c_j)

    finalize = functools.partial(
        _finalize_kernel, class_num=K, temperature=float(temperature))
    out = pl.pallas_call(
        finalize,
        grid=(1,),
        in_specs=[pl.BlockSpec((S, K, K), lambda i: (0, 0, 0))] * 4
                + [pl.BlockSpec((S, 1, K), lambda i: (0, 0, 0))] * 2,
        out_specs=pl.BlockSpec((1, 1), lambda i: (0, 0),
                               memory_space=pltpu.MemorySpace.SMEM),
        out_shape=jax.ShapeDtypeStruct((1, 1), jnp.float32),
    )(gii, gij, gji, gjj, si, sj)
    return out[0, 0]


# ---------------------------------------------------------------------------
# Pure-JAX reference mirroring the PyTorch module line-by-line.
# ---------------------------------------------------------------------------
def cluster_loss_ref(c_i, c_j, class_num, temperature):
    K = class_num
    N = 2 * K
    p_i = jnp.sum(c_i, axis=0)
    p_i = p_i / jnp.sum(p_i)
    ne_i = math.log(K) + jnp.sum(p_i * jnp.log(p_i))
    p_j = jnp.sum(c_j, axis=0)
    p_j = p_j / jnp.sum(p_j)
    ne_j = math.log(K) + jnp.sum(p_j * jnp.log(p_j))
    ne_loss = ne_i + ne_j

    c = jnp.concatenate([c_i.T, c_j.T], axis=0)                           # (N, B)
    cn = c / jnp.maximum(jnp.linalg.norm(c, axis=1, keepdims=True), 1e-8)
    sim = (cn @ cn.T) / temperature
    sim_i_j = jnp.diagonal(sim, offset=K)
    sim_j_i = jnp.diagonal(sim, offset=-K)
    positive = jnp.concatenate([sim_i_j, sim_j_i]).reshape(N, 1)

    eye = jnp.eye(N, dtype=bool)
    pair = jnp.eye(N, k=K, dtype=bool) | jnp.eye(N, k=-K, dtype=bool)
    mask = ~(eye | pair)
    negative = sim[mask].reshape(N, N - 2)

    logits = jnp.concatenate([positive, negative], axis=1)                # (N, N-1)
    loss = jnp.sum(jax.nn.logsumexp(logits, axis=1) - logits[:, 0]) / N
    return loss + ne_loss


if __name__ == "__main__":
    class_num = 8
    temperature = 0.5

    key = jax.random.PRNGKey(0)
    k1, k2, k3, k4 = jax.random.split(key, 4)

    # Case 1: small, single-tile path (softmax rows = soft cluster assignments).
    batch = 16
    c_i = jax.nn.softmax(jax.random.normal(k1, (batch, class_num), jnp.float32), axis=-1)
    c_j = jax.nn.softmax(jax.random.normal(k2, (batch, class_num), jnp.float32), axis=-1)
    out = jax.block_until_ready(cluster_loss(c_i, c_j, class_num, temperature))
    ref = cluster_loss_ref(c_i, c_j, class_num, temperature)
    assert jnp.allclose(out, ref, rtol=5e-4, atol=5e-4), (out, ref)

    # Case 2: exercise the tiled / dual-split / ragged-tail path at small size.
    batch2 = 200
    c_i2 = jax.nn.softmax(jax.random.normal(k3, (batch2, class_num), jnp.float32), axis=-1)
    c_j2 = jax.nn.softmax(jax.random.normal(k4, (batch2, class_num), jnp.float32), axis=-1)
    out2 = jax.block_until_ready(
        cluster_loss(c_i2, c_j2, class_num, temperature, block_rows=64, num_splits=2))
    ref2 = cluster_loss_ref(c_i2, c_j2, class_num, temperature)
    assert jnp.allclose(out2, ref2, rtol=5e-4, atol=5e-4), (out2, ref2)

    print("KERNEL_OK")
</pallas_src>

<mosaic_0001>
module attributes {stable_mosaic.version = 11 : i64} {
  func.func @_accum_kernel(%arg0: i32, %arg1: i32, %arg2: memref<16x8xf32, #tpu.memory_space<vmem>>, %arg3: memref<16x8xf32, #tpu.memory_space<vmem>>, %arg4: memref<1x8x8xf32, #tpu.memory_space<vmem>>, %arg5: memref<1x8x8xf32, #tpu.memory_space<vmem>>, %arg6: memref<1x8x8xf32, #tpu.memory_space<vmem>>, %arg7: memref<1x8x8xf32, #tpu.memory_space<vmem>>, %arg8: memref<1x1x8xf32, #tpu.memory_space<vmem>>, %arg9: memref<1x1x8xf32, #tpu.memory_space<vmem>>) attributes {dimension_semantics = [#tpu.dimension_semantics<parallel>, #tpu.dimension_semantics<arbitrary>], iteration_bounds = array<i64: 1, 1>, scalar_prefetch = 0 : i64, scratch_operands = 0 : i64, tpu.core_type = #tpu.core_type<tc>, window_params = [{transform_indices = @transform_0, window_bounds = array<i64: 16, 8>}, {transform_indices = @transform_1, window_bounds = array<i64: 16, 8>}, {transform_indices = @transform_2, window_bounds = array<i64: 1, 8, 8>}, {transform_indices = @transform_3, window_bounds = array<i64: 1, 8, 8>}, {transform_indices = @transform_4, window_bounds = array<i64: 1, 8, 8>}, {transform_indices = @transform_5, window_bounds = array<i64: 1, 8, 8>}, {transform_indices = @transform_6, window_bounds = array<i64: 1, 1, 8>}, {transform_indices = @transform_7, window_bounds = array<i64: 1, 1, 8>}]} {
    %c0_i32 = arith.constant 0 : i32
    %0 = arith.cmpi eq, %arg1, %c0_i32 : i32
    %1 = arith.extui %0 : i1 to i32
    %c0_i32_0 = arith.constant 0 : i32
    %2 = arith.cmpi ne, %1, %c0_i32_0 : i32
    scf.if %2 {
      %cst_45 = arith.constant 0.000000e+00 : f32
      %49 = vector.broadcast %cst_45 : f32 to vector<8x8xf32>
      %c0_46 = arith.constant 0 : index
      %c0_47 = arith.constant 0 : index
      %c0_48 = arith.constant 0 : index
      %50 = vector.load %arg4[%c0_46, %c0_47, %c0_48] : memref<1x8x8xf32, #tpu.memory_space<vmem>>, vector<1x8x8xf32>
      %51 = vector.shape_cast %50 : vector<1x8x8xf32> to vector<8x8xf32>
      %52 = vector.shape_cast %49 : vector<8x8xf32> to vector<1x8x8xf32>
      tpu.vector_store %arg4[%c0_46, %c0_47, %c0_48], %52 {strides = array<i32>} : memref<1x8x8xf32, #tpu.memory_space<vmem>>, vector<1x8x8xf32>,
      %cst_49 = arith.constant 0.000000e+00 : f32
      %53 = vector.broadcast %cst_49 : f32 to vector<8x8xf32>
      %c0_50 = arith.constant 0 : index
      %c0_51 = arith.constant 0 : index
      %c0_52 = arith.constant 0 : index
      %54 = vector.load %arg5[%c0_50, %c0_51, %c0_52] : memref<1x8x8xf32, #tpu.memory_space<vmem>>, vector<1x8x8xf32>
      %55 = vector.shape_cast %54 : vector<1x8x8xf32> to vector<8x8xf32>
      %56 = vector.shape_cast %53 : vector<8x8xf32> to vector<1x8x8xf32>
      tpu.vector_store %arg5[%c0_50, %c0_51, %c0_52], %56 {strides = array<i32>} : memref<1x8x8xf32, #tpu.memory_space<vmem>>, vector<1x8x8xf32>,
      %cst_53 = arith.constant 0.000000e+00 : f32
      %57 = vector.broadcast %cst_53 : f32 to vector<8x8xf32>
      %c0_54 = arith.constant 0 : index
      %c0_55 = arith.constant 0 : index
      %c0_56 = arith.constant 0 : index
      %58 = vector.load %arg6[%c0_54, %c0_55, %c0_56] : memref<1x8x8xf32, #tpu.memory_space<vmem>>, vector<1x8x8xf32>
      %59 = vector.shape_cast %58 : vector<1x8x8xf32> to vector<8x8xf32>
      %60 = vector.shape_cast %57 : vector<8x8xf32> to vector<1x8x8xf32>
      tpu.vector_store %arg6[%c0_54, %c0_55, %c0_56], %60 {strides = array<i32>} : memref<1x8x8xf32, #tpu.memory_space<vmem>>, vector<1x8x8xf32>,
      %cst_57 = arith.constant 0.000000e+00 : f32
      %61 = vector.broadcast %cst_57 : f32 to vector<8x8xf32>
      %c0_58 = arith.constant 0 : index
      %c0_59 = arith.constant 0 : index
      %c0_60 = arith.constant 0 : index
      %62 = vector.load %arg7[%c0_58, %c0_59, %c0_60] : memref<1x8x8xf32, #tpu.memory_space<vmem>>, vector<1x8x8xf32>
      %63 = vector.shape_cast %62 : vector<1x8x8xf32> to vector<8x8xf32>
      %64 = vector.shape_cast %61 : vector<8x8xf32> to vector<1x8x8xf32>
      tpu.vector_store %arg7[%c0_58, %c0_59, %c0_60], %64 {strides = array<i32>} : memref<1x8x8xf32, #tpu.memory_space<vmem>>, vector<1x8x8xf32>,
      %cst_61 = arith.constant 0.000000e+00 : f32
      %65 = vector.broadcast %cst_61 : f32 to vector<1x8xf32>
      %c0_62 = arith.constant 0 : index
      %c0_63 = arith.constant 0 : index
      %c0_64 = arith.constant 0 : index
      %66 = vector.load %arg8[%c0_62, %c0_63, %c0_64] : memref<1x1x8xf32, #tpu.memory_space<vmem>>, vector<1x1x8xf32>
      %67 = vector.shape_cast %66 : vector<1x1x8xf32> to vector<1x8xf32>
      %68 = vector.shape_cast %65 : vector<1x8xf32> to vector<1x1x8xf32>
      tpu.vector_store %arg8[%c0_62, %c0_63, %c0_64], %68 {strides = array<i32>} : memref<1x1x8xf32, #tpu.memory_space<vmem>>, vector<1x1x8xf32>,
      %cst_65 = arith.constant 0.000000e+00 : f32
      %69 = vector.broadcast %cst_65 : f32 to vector<1x8xf32>
      %c0_66 = arith.constant 0 : index
      %c0_67 = arith.constant 0 : index
      %c0_68 = arith.constant 0 : index
      %70 = vector.load %arg9[%c0_66, %c0_67, %c0_68] : memref<1x1x8xf32, #tpu.memory_space<vmem>>, vector<1x1x8xf32>
      %71 = vector.shape_cast %70 : vector<1x1x8xf32> to vector<1x8xf32>
      %72 = vector.shape_cast %69 : vector<1x8xf32> to vector<1x1x8xf32>
      tpu.vector_store %arg9[%c0_66, %c0_67, %c0_68], %72 {strides = array<i32>} : memref<1x1x8xf32, #tpu.memory_space<vmem>>, vector<1x1x8xf32>,
    } else {
    }
    %c0 = arith.constant 0 : index
    %c0_1 = arith.constant 0 : index
    %3 = vector.load %arg2[%c0, %c0_1] : memref<16x8xf32, #tpu.memory_space<vmem>>, vector<16x8xf32>
    %c0_2 = arith.constant 0 : index
    %c0_3 = arith.constant 0 : index
    %4 = vector.load %arg3[%c0_2, %c0_3] : memref<16x8xf32, #tpu.memory_space<vmem>>, vector<16x8xf32>
    %c0_4 = arith.constant 0 : index
    %c0_5 = arith.constant 0 : index
    %c0_6 = arith.constant 0 : index
    %5 = vector.load %arg4[%c0_4, %c0_5, %c0_6] : memref<1x8x8xf32, #tpu.memory_space<vmem>>, vector<1x8x8xf32>
    %6 = vector.shape_cast %5 : vector<1x8x8xf32> to vector<8x8xf32>
    %cst = arith.constant dense<0.000000e+00> : vector<8x8xf32>
    %7 = tpu.matmul %3, %3, %cst {dimension_numbers = #tpu.dot_dimension_numbers<[0], [0], [1], [1], [0, 1, 1, 1], [], []>} : vector<16x8xf32>, vector<16x8xf32>, vector<8x8xf32> -> vector<8x8xf32>
    %8 = arith.addf %6, %7 : vector<8x8xf32>
    %c0_7 = arith.constant 0 : index
    %c0_8 = arith.constant 0 : index
    %c0_9 = arith.constant 0 : index
    %9 = vector.load %arg4[%c0_7, %c0_8, %c0_9] : memref<1x8x8xf32, #tpu.memory_space<vmem>>, vector<1x8x8xf32>
    %10 = vector.shape_cast %9 : vector<1x8x8xf32> to vector<8x8xf32>
    %11 = vector.shape_cast %8 : vector<8x8xf32> to vector<1x8x8xf32>
    tpu.vector_store %arg4[%c0_7, %c0_8, %c0_9], %11 {strides = array<i32>} : memref<1x8x8xf32, #tpu.memory_space<vmem>>, vector<1x8x8xf32>,
    %c0_10 = arith.constant 0 : index
    %c0_11 = arith.constant 0 : index
    %c0_12 = arith.constant 0 : index
    %12 = vector.load %arg5[%c0_10, %c0_11, %c0_12] : memref<1x8x8xf32, #tpu.memory_space<vmem>>, vector<1x8x8xf32>
    %13 = vector.shape_cast %12 : vector<1x8x8xf32> to vector<8x8xf32>
    %cst_13 = arith.constant dense<0.000000e+00> : vector<8x8xf32>
    %14 = tpu.matmul %3, %4, %cst_13 {dimension_numbers = #tpu.dot_dimension_numbers<[0], [0], [1], [1], [0, 1, 1, 1], [], []>} : vector<16x8xf32>, vector<16x8xf32>, vector<8x8xf32> -> vector<8x8xf32>
    %15 = arith.addf %13, %14 : vector<8x8xf32>
    %c0_14 = arith.constant 0 : index
    %c0_15 = arith.constant 0 : index
    %c0_16 = arith.constant 0 : index
    %16 = vector.load %arg5[%c0_14, %c0_15, %c0_16] : memref<1x8x8xf32, #tpu.memory_space<vmem>>, vector<1x8x8xf32>
    %17 = vector.shape_cast %16 : vector<1x8x8xf32> to vector<8x8xf32>
    %18 = vector.shape_cast %15 : vector<8x8xf32> to vector<1x8x8xf32>
    tpu.vector_store %arg5[%c0_14, %c0_15, %c0_16], %18 {strides = array<i32>} : memref<1x8x8xf32, #tpu.memory_space<vmem>>, vector<1x8x8xf32>,
    %c0_17 = arith.constant 0 : index
    %c0_18 = arith.constant 0 : index
    %c0_19 = arith.constant 0 : index
    %19 = vector.load %arg6[%c0_17, %c0_18, %c0_19] : memref<1x8x8xf32, #tpu.memory_space<vmem>>, vector<1x8x8xf32>
    %20 = vector.shape_cast %19 : vector<1x8x8xf32> to vector<8x8xf32>
    %cst_20 = arith.constant dense<0.000000e+00> : vector<8x8xf32>
    %21 = tpu.matmul %4, %3, %cst_20 {dimension_numbers = #tpu.dot_dimension_numbers<[0], [0], [1], [1], [0, 1, 1, 1], [], []>} : vector<16x8xf32>, vector<16x8xf32>, vector<8x8xf32> -> vector<8x8xf32>
    %22 = arith.addf %20, %21 : vector<8x8xf32>
    %c0_21 = arith.constant 0 : index
    %c0_22 = arith.constant 0 : index
    %c0_23 = arith.constant 0 : index
    %23 = vector.load %arg6[%c0_21, %c0_22, %c0_23] : memref<1x8x8xf32, #tpu.memory_space<vmem>>, vector<1x8x8xf32>
    %24 = vector.shape_cast %23 : vector<1x8x8xf32> to vector<8x8xf32>
    %25 = vector.shape_cast %22 : vector<8x8xf32> to vector<1x8x8xf32>
    tpu.vector_store %arg6[%c0_21, %c0_22, %c0_23], %25 {strides = array<i32>} : memref<1x8x8xf32, #tpu.memory_space<vmem>>, vector<1x8x8xf32>,
    %c0_24 = arith.constant 0 : index
    %c0_25 = arith.constant 0 : index
    %c0_26 = arith.constant 0 : index
    %26 = vector.load %arg7[%c0_24, %c0_25, %c0_26] : memref<1x8x8xf32, #tpu.memory_space<vmem>>, vector<1x8x8xf32>
    %27 = vector.shape_cast %26 : vector<1x8x8xf32> to vector<8x8xf32>
    %cst_27 = arith.constant dense<0.000000e+00> : vector<8x8xf32>
    %28 = tpu.matmul %4, %4, %cst_27 {dimension_numbers = #tpu.dot_dimension_numbers<[0], [0], [1], [1], [0, 1, 1, 1], [], []>} : vector<16x8xf32>, vector<16x8xf32>, vector<8x8xf32> -> vector<8x8xf32>
    %29 = arith.addf %27, %28 : vector<8x8xf32>
    %c0_28 = arith.constant 0 : index
    %c0_29 = arith.constant 0 : index
    %c0_30 = arith.constant 0 : index
    %30 = vector.load %arg7[%c0_28, %c0_29, %c0_30] : memref<1x8x8xf32, #tpu.memory_space<vmem>>, vector<1x8x8xf32>
    %31 = vector.shape_cast %30 : vector<1x8x8xf32> to vector<8x8xf32>
    %32 = vector.shape_cast %29 : vector<8x8xf32> to vector<1x8x8xf32>
    tpu.vector_store %arg7[%c0_28, %c0_29, %c0_30], %32 {strides = array<i32>} : memref<1x8x8xf32, #tpu.memory_space<vmem>>, vector<1x8x8xf32>,
    %c0_31 = arith.constant 0 : index
    %c0_32 = arith.constant 0 : index
    %c0_33 = arith.constant 0 : index
    %33 = vector.load %arg8[%c0_31, %c0_32, %c0_33] : memref<1x1x8xf32, #tpu.memory_space<vmem>>, vector<1x1x8xf32>
    %34 = vector.shape_cast %33 : vector<1x1x8xf32> to vector<1x8xf32>
    %cst_34 = arith.constant dense<0.000000e+00> : vector<8xf32>
    %35 = vector.multi_reduction <add>, %3, %cst_34 [0] : vector<16x8xf32> to vector<8xf32>
    %36 = vector.shape_cast %35 : vector<8xf32> to vector<1x8xf32>
    %37 = arith.addf %34, %36 : vector<1x8xf32>
    %c0_35 = arith.constant 0 : index
    %c0_36 = arith.constant 0 : index
    %c0_37 = arith.constant 0 : index
    %38 = vector.load %arg8[%c0_35, %c0_36, %c0_37] : memref<1x1x8xf32, #tpu.memory_space<vmem>>, vector<1x1x8xf32>
    %39 = vector.shape_cast %38 : vector<1x1x8xf32> to vector<1x8xf32>
    %40 = vector.shape_cast %37 : vector<1x8xf32> to vector<1x1x8xf32>
    tpu.vector_store %arg8[%c0_35, %c0_36, %c0_37], %40 {strides = array<i32>} : memref<1x1x8xf32, #tpu.memory_space<vmem>>, vector<1x1x8xf32>,
    %c0_38 = arith.constant 0 : index
    %c0_39 = arith.constant 0 : index
    %c0_40 = arith.constant 0 : index
    %41 = vector.load %arg9[%c0_38, %c0_39, %c0_40] : memref<1x1x8xf32, #tpu.memory_space<vmem>>, vector<1x1x8xf32>
    %42 = vector.shape_cast %41 : vector<1x1x8xf32> to vector<1x8xf32>
    %cst_41 = arith.constant dense<0.000000e+00> : vector<8xf32>
    %43 = vector.multi_reduction <add>, %4, %cst_41 [0] : vector<16x8xf32> to vector<8xf32>
    %44 = vector.shape_cast %43 : vector<8xf32> to vector<1x8xf32>
    %45 = arith.addf %42, %44 : vector<1x8xf32>
    %c0_42 = arith.constant 0 : index
    %c0_43 = arith.constant 0 : index
    %c0_44 = arith.constant 0 : index
    %46 = vector.load %arg9[%c0_42, %c0_43, %c0_44] : memref<1x1x8xf32, #tpu.memory_space<vmem>>, vector<1x1x8xf32>
    %47 = vector.shape_cast %46 : vector<1x1x8xf32> to vector<1x8xf32>
    %48 = vector.shape_cast %45 : vector<1x8xf32> to vector<1x1x8xf32>
    tpu.vector_store %arg9[%c0_42, %c0_43, %c0_44], %48 {strides = array<i32>} : memref<1x1x8xf32, #tpu.memory_space<vmem>>, vector<1x1x8xf32>,
    return
  }
  func.func @transform_0(%arg0: i32, %arg1: i32) -> (i32, i32) {
    %c1_i32 = arith.constant 1 : i32
    %0 = arith.muli %arg0, %c1_i32 : i32
    %1 = arith.addi %0, %arg1 : i32
    %c0_i32 = arith.constant 0 : i32
    %2 = arith.minsi %1, %c0_i32 : i32
    %c0_i32_0 = arith.constant 0 : i32
    %c0_i32_1 = arith.constant 0 : i32
    return %2, %c0_i32_0 : i32, i32
  }
  func.func @transform_1(%arg0: i32, %arg1: i32) -> (i32, i32) {
    %c1_i32 = arith.constant 1 : i32
    %0 = arith.muli %arg0, %c1_i32 : i32
    %1 = arith.addi %0, %arg1 : i32
    %c0_i32 = arith.constant 0 : i32
    %2 = arith.minsi %1, %c0_i32 : i32
    %c0_i32_0 = arith.constant 0 : i32
    %c0_i32_1 = arith.constant 0 : i32
    return %2, %c0_i32_0 : i32, i32
  }
  func.func @transform_2(%arg0: i32, %arg1: i32) -> (i32, i32, i32) {
    %c0_i32 = arith.constant 0 : i32
    %c0_i32_0 = arith.constant 0 : i32
    %c0_i32_1 = arith.constant 0 : i32
    return %arg0, %c0_i32, %c0_i32_0 : i32, i32, i32
  }
  func.func @transform_3(%arg0: i32, %arg1: i32) -> (i32, i32, i32) {
    %c0_i32 = arith.constant 0 : i32
    %c0_i32_0 = arith.constant 0 : i32
    %c0_i32_1 = arith.constant 0 : i32
    return %arg0, %c0_i32, %c0_i32_0 : i32, i32, i32
  }
  func.func @transform_4(%arg0: i32, %arg1: i32) -> (i32, i32, i32) {
    %c0_i32 = arith.constant 0 : i32
    %c0_i32_0 = arith.constant 0 : i32
    %c0_i32_1 = arith.constant 0 : i32
    return %arg0, %c0_i32, %c0_i32_0 : i32, i32, i32
  }
  func.func @transform_5(%arg0: i32, %arg1: i32) -> (i32, i32, i32) {
    %c0_i32 = arith.constant 0 : i32
    %c0_i32_0 = arith.constant 0 : i32
    %c0_i32_1 = arith.constant 0 : i32
    return %arg0, %c0_i32, %c0_i32_0 : i32, i32, i32
  }
  func.func @transform_6(%arg0: i32, %arg1: i32) -> (i32, i32, i32) {
    %c0_i32 = arith.constant 0 : i32
    %c0_i32_0 = arith.constant 0 : i32
    %c0_i32_1 = arith.constant 0 : i32
    return %arg0, %c0_i32, %c0_i32_0 : i32, i32, i32
  }
  func.func @transform_7(%arg0: i32, %arg1: i32) -> (i32, i32, i32) {
    %c0_i32 = arith.constant 0 : i32
    %c0_i32_0 = arith.constant 0 : i32
    %c0_i32_1 = arith.constant 0 : i32
    return %arg0, %c0_i32, %c0_i32_0 : i32, i32, i32
  }
}

</mosaic_0001>

<llo_original>
// kernel: tpu_custom_call.1
$region0: #{tpu_custom_call.1}
  #allocation0 [shape = 'u32[]', space=smem, size = 0x4, offset = 0x4, fixed_abs, tag = 'smem constant byte address 0x4 - core index']
  #allocation1 [shape = 'u32[144,128]{1,0:T(1,128)}', space=vmem, size = 0x12000, scoped, tag = 'internal scratch']
  %s0 = inlined_call_operand.vmem [shape: f32[16,8], index: 0, kind: input, shape index: {}]
  %s1 = inlined_call_operand.vmem [shape: f32[16,8], index: 1, kind: input, shape index: {}]
  %s2 = inlined_call_operand.hbm [shape: f32[1,8,8], index: 2, kind: output, shape index: {0}]
  %s3 = inlined_call_operand.hbm [shape: f32[1,8,8], index: 3, kind: output, shape index: {1}]
  %s4 = inlined_call_operand.hbm [shape: f32[1,8,8], index: 4, kind: output, shape index: {2}]
  %s5 = inlined_call_operand.hbm [shape: f32[1,8,8], index: 5, kind: output, shape index: {3}]
  %s6 = inlined_call_operand.hbm [shape: f32[1,1,8], index: 6, kind: output, shape index: {4}]
  %s7 = inlined_call_operand.hbm [shape: f32[1,1,8], index: 7, kind: output, shape index: {5}]
  %8 = xla_tuple %s2, %s3, %s4, %s5, %s6, %s7
  %s9 = sld [smem:[#allocation0]]
  $region62: #{tpu_custom_call.1} parent=0
    _
  %s11 = ssub.s32 1, %s9
  %s12 = scalar_select 0, %s11, %s9
  $region1: #{tpu_custom_call.1} parent=0
    #allocation2 [shape = 'u8[4096]{0}', space=vmem, size = 0x1000, scoped, tag = 'output window, operand 0, single buffered']
    #allocation3 [shape = 's32[1]{0}', space=sflag, size = 0x4, scoped, tag = 'scoped memory for tpu_custom_call.1']
    #allocation4 [shape = 'u8[4096]{0}', space=vmem, size = 0x1000, scoped, tag = 'output window, operand 1, single buffered']
    #allocation5 [shape = 's32[1]{0}', space=sflag, size = 0x4, scoped, tag = 'scoped memory for tpu_custom_call.1']
    #allocation6 [shape = 'u8[4096]{0}', space=vmem, size = 0x1000, scoped, tag = 'output window, operand 2, single buffered']
    #allocation7 [shape = 'u8[4096]{0}', space=vmem, size = 0x1000, scoped, tag = 'output window, operand 3, single buffered']
    #allocation8 [shape = 's32[1]{0}', space=sflag, size = 0x4, scoped, tag = 'scoped memory for tpu_custom_call.1']
    #allocation9 [shape = 'u8[512]{0}', space=vmem, size = 0x400, scoped, tag = 'output window, operand 4, single buffered']
    #allocation10 [shape = 'u8[512]{0}', space=vmem, size = 0x400, scoped, tag = 'output window, operand 5, single buffered']
    #allocation11 [shape = 's32[1]{0}', space=sflag, size = 0x4, scoped, tag = 'scoped memory for tpu_custom_call.1']
    %13 = vsyncpa [#allocation3], 0
    %14 = vsyncpa [#allocation5], 0
    %15 = vsyncpa [#allocation8], 0
    %16 = vsyncpa [#allocation11], 0
    // Predicated region
    $region2: #{tpu_custom_call.1} parent=1 // pred_check
      _
    $region3: #{tpu_custom_call.1} parent=1 // pred_check_branch
      %18 = sbr.rel (0) target = $region5
    $region4: #{tpu_custom_call.1} parent=1 // pred_region
      %s19 = sadd.s32 0, 0
      %p20 = scmp.lt.s32.totalorder %s19, 0
      %s21 = scalar_select %p20, %s19, 0
      %s22 = smul.u32 2, %s21
      %p23 = scmp.lt.s32.totalorder %s22, 1
      %s24 = scalar_select %p23, %s22, 1
      %s25 = smul.addr %s24, 8
      %s26 = scalar_lea.vmem %s0, %s25
      %s27 = sadd.s32 0, 0
      %p28 = scmp.lt.s32.totalorder %s27, 0
      %s29 = scalar_select %p28, %s27, 0
      %s30 = smul.u32 2, %s29
    $region5: #{tpu_custom_call.1} parent=1 // pred_fallthru
      _
    // Predicated region
    $region6: #{tpu_custom_call.1} parent=1 // pred_check
      _
    $region7: #{tpu_custom_call.1} parent=1 // pred_check_branch
      %32 = sbr.rel (0) target = $region9
    $region8: #{tpu_custom_call.1} parent=1 // pred_region
      %s33 = sadd.s32 0, 0
      %p34 = scmp.lt.s32.totalorder %s33, 0
      %s35 = scalar_select %p34, %s33, 0
      %s36 = smul.u32 2, %s35
      %p37 = scmp.lt.s32.totalorder %s36, 1
      %s38 = scalar_select %p37, %s36, 1
      %s39 = smul.addr %s38, 8
      %s40 = scalar_lea.vmem %s1, %s39
      %s41 = sadd.s32 0, 0
      %p42 = scmp.lt.s32.totalorder %s41, 0
      %s43 = scalar_select %p42, %s41, 0
      %s44 = smul.u32 2, %s43
    $region9: #{tpu_custom_call.1} parent=1 // pred_fallthru
      _
    %s45 = sadd.s32 0, 0
    %p46 = scmp.lt.s32.totalorder %s45, 0
    %s47 = scalar_select %p46, %s45, 0
    %s48 = smul.u32 2, %s47
    %p49 = scmp.lt.s32.totalorder %s48, 1
    %s50 = scalar_select %p49, %s48, 1
    %s51 = smul.addr %s50, 8
    %s52 = scalar_lea.vmem %s0, %s51
    %s53 = sadd.s32 0, 0
    %p54 = scmp.lt.s32.totalorder %s53, 0
    %s55 = scalar_select %p54, %s53, 0
    %s56 = smul.u32 2, %s55
    %p57 = scmp.lt.s32.totalorder %s56, 1
    %s58 = scalar_select %p57, %s56, 1
    %s59 = smul.addr %s58, 8
    %s60 = scalar_lea.vmem %s1, %s59
    %s61 = sadd.s32 0, 0
    %p62 = scmp.lt.s32.totalorder %s61, 0
    %s63 = scalar_select %p62, %s61, 0
    %s64 = smul.u32 2, %s63
    %p65 = scmp.lt.s32.totalorder %s64, 1
    %s66 = scalar_select %p65, %s64, 1
    %s67 = smul.addr %s66, 8
    %s68 = scalar_lea.vmem %s0, %s67
    %s69 = sadd.s32 0, 0
    %p70 = scmp.lt.s32.totalorder %s69, 0
    %s71 = scalar_select %p70, %s69, 0
    %s72 = smul.u32 2, %s71
    %s73 = sadd.s32 0, 0
    %p74 = scmp.lt.s32.totalorder %s73, 0
    %s75 = scalar_select %p74, %s73, 0
    %s76 = smul.u32 2, %s75
    %p77 = scmp.lt.s32.totalorder %s76, 1
    %s78 = scalar_select %p77, %s76, 1
    %s79 = smul.addr %s78, 8
    %s80 = scalar_lea.vmem %s1, %s79
    %s81 = sadd.s32 0, 0
    %p82 = scmp.lt.s32.totalorder %s81, 0
    %s83 = scalar_select %p82, %s81, 0
    %s84 = smul.u32 2, %s83
    %p85 = scmp.eq.s32.totalorder 0, 0
    // Predicated region
    $region10: #{tpu_custom_call.1} parent=1 // pred_check
      %p86 = pneg %p85
    $region11: #{tpu_custom_call.1} parent=1 // pred_check_branch
      %88 = sbr.rel (%p86) target = $region13
    $region12: #{tpu_custom_call.1} parent=1 // pred_region
      %vm89 = vcmask 64512
      %90 = vst.msk [vmem:[#allocation2] sm:$0xff] %vm89, 0.0
      %91 = vst.msk [vmem:[#allocation4] sm:$0xff] %vm89, 0.0
      %92 = vst.msk [vmem:[#allocation6] sm:$0xff] %vm89, 0.0
      %93 = vst.msk [vmem:[#allocation7] sm:$0xff] %vm89, 0.0
      %vm94 = vcmask 57344
      %95 = vst.msk [vmem:[#allocation9] sm:$0x1] %vm94, 0.0
      %96 = vst.msk [vmem:[#allocation10] sm:$0x1] %vm94, 0.0
    $region13: #{tpu_custom_call.1} parent=1 // pred_fallthru
      _
    %v97 = vld [vmem:[%s68] sm:$0xff]
    %v98 = vld [vmem:[%s68 + $0x8] sm:$0xff]
    %v99 = vld [vmem:[%s80] sm:$0xff]
    %v100 = vld [vmem:[%s80 + $0x8] sm:$0xff]
    %v101 = vld [vmem:[#allocation2] sm:$0xff]
    %102 = vxpose.xlu0.b32.start [1/16] %v97, 128
    %103 = vxpose.xlu0.b32.cont [2/16] %v98, 128
    %104 = vxpose.xlu0.b32.cont [3/16] 0.0, 128
    %105 = vxpose.xlu0.b32.cont [4/16] 0.0, 128
    %106 = vxpose.xlu0.b32.cont [5/16] 0.0, 128
    %107 = vxpose.xlu0.b32.cont [6/16] 0.0, 128
    %108 = vxpose.xlu0.b32.cont [7/16] 0.0, 128
    %109 = vxpose.xlu0.b32.cont [8/16] 0.0, 128
    %110 = vxpose.xlu0.b32.cont [9/16] 0.0, 128
    %111 = vxpose.xlu0.b32.cont [10/16] 0.0, 128
    %112 = vxpose.xlu0.b32.cont [11/16] 0.0, 128
    %113 = vxpose.xlu0.b32.cont [12/16] 0.0, 128
    %114 = vxpose.xlu0.b32.cont [13/16] 0.0, 128
    %115 = vxpose.xlu0.b32.cont [14/16] 0.0, 128
    %116 = vxpose.xlu0.b32.cont [15/16] 0.0, 128
    %117 = vxpose.xlu0.b32.end [16/16] 0.0, 128
    %v118 = vpop.trf.xlu0
    %v119 = vpop.trf.xlu0
    %v120 = vpop.trf.xlu0
    %v121 = vpop.trf.xlu0
    %v122 = vpop.trf.xlu0
    %v123 = vpop.trf.xlu0
    %v124 = vpop.trf.xlu0
    %v125 = vpop.trf.xlu0
    %v126 = vpop.trf.xlu0
    %v127 = vpop.trf.xlu0
    %v128 = vpop.trf.xlu0
    %v129 = vpop.trf.xlu0
    %v130 = vpop.trf.xlu0
    %v131 = vpop.trf.xlu0
    %v132 = vpop.trf.xlu0
    %v133 = vpop.trf.xlu0
    %vm134 = vcmask 130048
    %v136 = vsel %vm134, %v118, 0
    %138 = vmatprep.subr.mxu0 0.0
    %139 = vmatpush1.msra.mxu0 %v97
    %140 = vmatprep.subr.mxu0 0.0
    %141 = vmatpush1.msra.mxu0 %v98
    %142 = vmatprep.subr.mxu0 0.0
    %143 = vmatpush1.msra.mxu0 0.0
    %144 = vmatprep.subr.mxu0 0.0
    %145 = vmatpush1.msra.mxu0 0.0
    %146 = vmatprep.subr.mxu0 0.0
    %147 = vmatpush1.msra.mxu0 0.0
    %148 = vmatprep.subr.mxu0 0.0
    %149 = vmatpush1.msra.mxu0 0.0
    %150 = vmatprep.subr.mxu0 0.0
    %151 = vmatpush1.msra.mxu0 0.0
    %152 = vmatprep.subr.mxu0 0.0
    %153 = vmatpush1.msra.mxu0 0.0
    %154 = vmatprep.subr.mxu0 0.0
    %155 = vmatpush1.msra.mxu0 0.0
    %156 = vmatprep.subr.mxu0 0.0
    %157 = vmatpush1.msra.mxu0 0.0
    %158 = vmatprep.subr.mxu0 0.0
    %159 = vmatpush1.msra.mxu0 0.0
    %160 = vmatprep.subr.mxu0 0.0
    %161 = vmatpush1.msra.mxu0 0.0
    %162 = vmatprep.subr.mxu0 0.0
    %163 = vmatpush1.msra.mxu0 0.0
    %164 = vmatprep.subr.mxu0 0.0
    %165 = vmatpush1.msra.mxu0 0.0
    %166 = vmatprep.subr.mxu0 0.0
    %167 = vmatpush1.msra.mxu0 0.0
    %168 = vmatprep.subr.mxu0 0.0
    %169 = vmatpush1.msra.mxu0 0.0
    %170 = vmatprep.subr.mxu0 0.0
    %171 = vmatpush1.msra.mxu0 0.0
    %172 = vmatprep.subr.mxu0 0.0
    %173 = vmatpush1.msra.mxu0 0.0
    %174 = vmatprep.subr.mxu0 0.0
    %175 = vmatpush1.msra.mxu0 0.0
    %176 = vmatprep.subr.mxu0 0.0
    %177 = vmatpush1.msra.mxu0 0.0
    %178 = vmatprep.subr.mxu0 0.0
    %179 = vmatpush1.msra.mxu0 0.0
    %180 = vmatprep.subr.mxu0 0.0
    %181 = vmatpush1.msra.mxu0 0.0
    %182 = vmatprep.subr.mxu0 0.0
    %183 = vmatpush1.msra.mxu0 0.0
    %184 = vmatprep.subr.mxu0 0.0
    %185 = vmatpush1.msra.mxu0 0.0
    %186 = vmatprep.subr.mxu0 0.0
    %187 = vmatpush1.msra.mxu0 0.0
    %188 = vmatprep.subr.mxu0 0.0
    %189 = vmatpush1.msra.mxu0 0.0
    %190 = vmatprep.subr.mxu0 0.0
    %191 = vmatpush1.msra.mxu0 0.0
    %192 = vmatprep.subr.mxu0 0.0
    %193 = vmatpush1.msra.mxu0 0.0
    %194 = vmatprep.subr.mxu0 0.0
    %195 = vmatpush1.msra.mxu0 0.0
    %196 = vmatprep.subr.mxu0 0.0
    %197 = vmatpush1.msra.mxu0 0.0
    %198 = vmatprep.subr.mxu0 0.0
    %199 = vmatpush1.msra.mxu0 0.0
    %200 = vmatprep.subr.mxu0 0.0
    %201 = vmatpush1.msra.mxu0 0.0
    %202 = vmatprep.mubr.f32.mxu0 0.0
    %203 = vmatmul.mubr.f32.gmra.mrb[0].mxu0 %v136
    %v204 = vpop.f32.mrb[0].mxu0
    %v205 = vadd.f32 0.0, %v204
    %v206 = vpop.f32.mrb[0].mxu0
    %207 = vdwg.mxu0
    %v208 = vadd.f32 %v101, %v205
    %vm209 = vcmask 64512
    %210 = vst.msk [vmem:[#allocation2] sm:$0xff] %vm209, %v208
    %v211 = vld [vmem:[#allocation4] sm:$0xff]
    %212 = vmatprep.subr.mxu0 0.0
    %213 = vmatpush1.msra.mxu0 %v99
    %214 = vmatprep.subr.mxu0 0.0
    %215 = vmatpush1.msra.mxu0 %v100
    %216 = vmatprep.subr.mxu0 0.0
    %217 = vmatpush1.msra.mxu0 0.0
    %218 = vmatprep.subr.mxu0 0.0
    %219 = vmatpush1.msra.mxu0 0.0
    %220 = vmatprep.subr.mxu0 0.0
    %221 = vmatpush1.msra.mxu0 0.0
    %222 = vmatprep.subr.mxu0 0.0
    %223 = vmatpush1.msra.mxu0 0.0
    %224 = vmatprep.subr.mxu0 0.0
    %225 = vmatpush1.msra.mxu0 0.0
    %226 = vmatprep.subr.mxu0 0.0
    %227 = vmatpush1.msra.mxu0 0.0
    %228 = vmatprep.subr.mxu0 0.0
    %229 = vmatpush1.msra.mxu0 0.0
    %230 = vmatprep.subr.mxu0 0.0
    %231 = vmatpush1.msra.mxu0 0.0
    %232 = vmatprep.subr.mxu0 0.0
    %233 = vmatpush1.msra.mxu0 0.0
    %234 = vmatprep.subr.mxu0 0.0
    %235 = vmatpush1.msra.mxu0 0.0
    %236 = vmatprep.subr.mxu0 0.0
    %237 = vmatpush1.msra.mxu0 0.0
    %238 = vmatprep.subr.mxu0 0.0
    %239 = vmatpush1.msra.mxu0 0.0
    %240 = vmatprep.subr.mxu0 0.0
    %241 = vmatpush1.msra.mxu0 0.0
    %242 = vmatprep.subr.mxu0 0.0
    %243 = vmatpush1.msra.mxu0 0.0
    %244 = vmatprep.subr.mxu0 0.0
    %245 = vmatpush1.msra.mxu0 0.0
    %246 = vmatprep.subr.mxu0 0.0
    %247 = vmatpush1.msra.mxu0 0.0
    %248 = vmatprep.subr.mxu0 0.0
    %249 = vmatpush1.msra.mxu0 0.0
    %250 = vmatprep.subr.mxu0 0.0
    %251 = vmatpush1.msra.mxu0 0.0
    %252 = vmatprep.subr.mxu0 0.0
    %253 = vmatpush1.msra.mxu0 0.0
    %254 = vmatprep.subr.mxu0 0.0
    %255 = vmatpush1.msra.mxu0 0.0
    %256 = vmatprep.subr.mxu0 0.0
    %257 = vmatpush1.msra.mxu0 0.0
    %258 = vmatprep.subr.mxu0 0.0
    %259 = vmatpush1.msra.mxu0 0.0
    %260 = vmatprep.subr.mxu0 0.0
    %261 = vmatpush1.msra.mxu0 0.0
    %262 = vmatprep.subr.mxu0 0.0
    %263 = vmatpush1.msra.mxu0 0.0
    %264 = vmatprep.subr.mxu0 0.0
    %265 = vmatpush1.msra.mxu0 0.0
    %266 = vmatprep.subr.mxu0 0.0
    %267 = vmatpush1.msra.mxu0 0.0
    %268 = vmatprep.subr.mxu0 0.0
    %269 = vmatpush1.msra.mxu0 0.0
    %270 = vmatprep.subr.mxu0 0.0
    %271 = vmatpush1.msra.mxu0 0.0
    %272 = vmatprep.subr.mxu0 0.0
    %273 = vmatpush1.msra.mxu0 0.0
    %274 = vmatprep.subr.mxu0 0.0
    %275 = vmatpush1.msra.mxu0 0.0
    %276 = vmatprep.mubr.f32.mxu0 0.0
    %277 = vmatmul.mubr.f32.gmra.mrb[0].mxu0 %v136
    %v278 = vpop.f32.mrb[0].mxu0
    %v279 = vadd.f32 0.0, %v278
    %v280 = vpop.f32.mrb[0].mxu0
    %281 = vdwg.mxu0
    %v282 = vadd.f32 %v211, %v279
    %283 = vst.msk [vmem:[#allocation4] sm:$0xff] %vm209, %v282
    %v284 = vld [vmem:[#allocation6] sm:$0xff]
    %285 = vxpose.xlu0.b32.start [1/16] %v99, 128
    %286 = vxpose.xlu0.b32.cont [2/16] %v100, 128
    %287 = vxpose.xlu0.b32.cont [3/16] 0.0, 128
    %288 = vxpose.xlu0.b32.cont [4/16] 0.0, 128
    %289 = vxpose.xlu0.b32.cont [5/16] 0.0, 128
    %290 = vxpose.xlu0.b32.cont [6/16] 0.0, 128
    %291 = vxpose.xlu0.b32.cont [7/16] 0.0, 128
    %292 = vxpose.xlu0.b32.cont [8/16] 0.0, 128
    %293 = vxpose.xlu0.b32.cont [9/16] 0.0, 128
    %294 = vxpose.xlu0.b32.cont [10/16] 0.0, 128
    %295 = vxpose.xlu0.b32.cont [11/16] 0.0, 128
    %296 = vxpose.xlu0.b32.cont [12/16] 0.0, 128
    %297 = vxpose.xlu0.b32.cont [13/16] 0.0, 128
    %298 = vxpose.xlu0.b32.cont [14/16] 0.0, 128
    %299 = vxpose.xlu0.b32.cont [15/16] 0.0, 128
    %300 = vxpose.xlu0.b32.end [16/16] 0.0, 128
    %v301 = vpop.trf.xlu0
    %v302 = vpop.trf.xlu0
    %v303 = vpop.trf.xlu0
    %v304 = vpop.trf.xlu0
    %v305 = vpop.trf.xlu0
    %v306 = vpop.trf.xlu0
    %v307 = vpop.trf.xlu0
    %v308 = vpop.trf.xlu0
    %v309 = vpop.trf.xlu0
    %v310 = vpop.trf.xlu0
    %v311 = vpop.trf.xlu0
    %v312 = vpop.trf.xlu0
    %v313 = vpop.trf.xlu0
    %v314 = vpop.trf.xlu0
    %v315 = vpop.trf.xlu0
    %v316 = vpop.trf.xlu0
    %v318 = vsel %vm134, %v301, 0
    %320 = vmatprep.subr.mxu0 0.0
    %321 = vmatpush1.msra.mxu0 %v97
    %322 = vmatprep.subr.mxu0 0.0
    %323 = vmatpush1.msra.mxu0 %v98
    %324 = vmatprep.subr.mxu0 0.0
    %325 = vmatpush1.msra.mxu0 0.0
    %326 = vmatprep.subr.mxu0 0.0
    %327 = vmatpush1.msra.mxu0 0.0
    %328 = vmatprep.subr.mxu0 0.0
    %329 = vmatpush1.msra.mxu0 0.0
    %330 = vmatprep.subr.mxu0 0.0
    %331 = vmatpush1.msra.mxu0 0.0
    %332 = vmatprep.subr.mxu0 0.0
    %333 = vmatpush1.msra.mxu0 0.0
    %334 = vmatprep.subr.mxu0 0.0
    %335 = vmatpush1.msra.mxu0 0.0
    %336 = vmatprep.subr.mxu0 0.0
    %337 = vmatpush1.msra.mxu0 0.0
    %338 = vmatprep.subr.mxu0 0.0
    %339 = vmatpush1.msra.mxu0 0.0
    %340 = vmatprep.subr.mxu0 0.0
    %341 = vmatpush1.msra.mxu0 0.0
    %342 = vmatprep.subr.mxu0 0.0
    %343 = vmatpush1.msra.mxu0 0.0
    %344 = vmatprep.subr.mxu0 0.0
    %345 = vmatpush1.msra.mxu0 0.0
    %346 = vmatprep.subr.mxu0 0.0
    %347 = vmatpush1.msra.mxu0 0.0
    %348 = vmatprep.subr.mxu0 0.0
    %349 = vmatpush1.msra.mxu0 0.0
    %350 = vmatprep.subr.mxu0 0.0
    %351 = vmatpush1.msra.mxu0 0.0
    %352 = vmatprep.subr.mxu0 0.0
    %353 = vmatpush1.msra.mxu0 0.0
    %354 = vmatprep.subr.mxu0 0.0
    %355 = vmatpush1.msra.mxu0 0.0
    %356 = vmatprep.subr.mxu0 0.0
    %357 = vmatpush1.msra.mxu0 0.0
    %358 = vmatprep.subr.mxu0 0.0
    %359 = vmatpush1.msra.mxu0 0.0
    %360 = vmatprep.subr.mxu0 0.0
    %361 = vmatpush1.msra.mxu0 0.0
    %362 = vmatprep.subr.mxu0 0.0
    %363 = vmatpush1.msra.mxu0 0.0
    %364 = vmatprep.subr.mxu0 0.0
    %365 = vmatpush1.msra.mxu0 0.0
    %366 = vmatprep.subr.mxu0 0.0
    %367 = vmatpush1.msra.mxu0 0.0
    %368 = vmatprep.subr.mxu0 0.0
    %369 = vmatpush1.msra.mxu0 0.0
    %370 = vmatprep.subr.mxu0 0.0
    %371 = vmatpush1.msra.mxu0 0.0
    %372 = vmatprep.subr.mxu0 0.0
    %373 = vmatpush1.msra.mxu0 0.0
    %374 = vmatprep.subr.mxu0 0.0
    %375 = vmatpush1.msra.mxu0 0.0
    %376 = vmatprep.subr.mxu0 0.0
    %377 = vmatpush1.msra.mxu0 0.0
    %378 = vmatprep.subr.mxu0 0.0
    %379 = vmatpush1.msra.mxu0 0.0
    %380 = vmatprep.subr.mxu0 0.0
    %381 = vmatpush1.msra.mxu0 0.0
    %382 = vmatprep.subr.mxu0 0.0
    %383 = vmatpush1.msra.mxu0 0.0
    %384 = vmatprep.mubr.f32.mxu0 0.0
    %385 = vmatmul.mubr.f32.gmra.mrb[0].mxu0 %v318
    %v386 = vpop.f32.mrb[0].mxu0
    %v387 = vadd.f32 0.0, %v386
    %v388 = vpop.f32.mrb[0].mxu0
    %389 = vdwg.mxu0
    %v390 = vadd.f32 %v284, %v387
    %391 = vst.msk [vmem:[#allocation6] sm:$0xff] %vm209, %v390
    %v392 = vld [vmem:[#allocation7] sm:$0xff]
    %393 = vmatprep.subr.mxu0 0.0
    %394 = vmatpush1.msra.mxu0 %v99
    %395 = vmatprep.subr.mxu0 0.0
    %396 = vmatpush1.msra.mxu0 %v100
    %397 = vmatprep.subr.mxu0 0.0
    %398 = vmatpush1.msra.mxu0 0.0
    %399 = vmatprep.subr.mxu0 0.0
    %400 = vmatpush1.msra.mxu0 0.0
    %401 = vmatprep.subr.mxu0 0.0
    %402 = vmatpush1.msra.mxu0 0.0
    %403 = vmatprep.subr.mxu0 0.0
    %404 = vmatpush1.msra.mxu0 0.0
    %405 = vmatprep.subr.mxu0 0.0
    %406 = vmatpush1.msra.mxu0 0.0
    %407 = vmatprep.subr.mxu0 0.0
    %408 = vmatpush1.msra.mxu0 0.0
    %409 = vmatprep.subr.mxu0 0.0
    %410 = vmatpush1.msra.mxu0 0.0
    %411 = vmatprep.subr.mxu0 0.0
    %412 = vmatpush1.msra.mxu0 0.0
    %413 = vmatprep.subr.mxu0 0.0
    %414 = vmatpush1.msra.mxu0 0.0
    %415 = vmatprep.subr.mxu0 0.0
    %416 = vmatpush1.msra.mxu0 0.0
    %417 = vmatprep.subr.mxu0 0.0
    %418 = vmatpush1.msra.mxu0 0.0
    %419 = vmatprep.subr.mxu0 0.0
    %420 = vmatpush1.msra.mxu0 0.0
    %421 = vmatprep.subr.mxu0 0.0
    %422 = vmatpush1.msra.mxu0 0.0
    %423 = vmatprep.subr.mxu0 0.0
    %424 = vmatpush1.msra.mxu0 0.0
    %425 = vmatprep.subr.mxu0 0.0
    %426 = vmatpush1.msra.mxu0 0.0
    %427 = vmatprep.subr.mxu0 0.0
    %428 = vmatpush1.msra.mxu0 0.0
    %429 = vmatprep.subr.mxu0 0.0
    %430 = vmatpush1.msra.mxu0 0.0
    %431 = vmatprep.subr.mxu0 0.0
    %432 = vmatpush1.msra.mxu0 0.0
    %433 = vmatprep.subr.mxu0 0.0
    %434 = vmatpush1.msra.mxu0 0.0
    %435 = vmatprep.subr.mxu0 0.0
    %436 = vmatpush1.msra.mxu0 0.0
    %437 = vmatprep.subr.mxu0 0.0
    %438 = vmatpush1.msra.mxu0 0.0
    %439 = vmatprep.subr.mxu0 0.0
    %440 = vmatpush1.msra.mxu0 0.0
    %441 = vmatprep.subr.mxu0 0.0
    %442 = vmatpush1.msra.mxu0 0.0
    %443 = vmatprep.subr.mxu0 0.0
    %444 = vmatpush1.msra.mxu0 0.0
    %445 = vmatprep.subr.mxu0 0.0
    %446 = vmatpush1.msra.mxu0 0.0
    %447 = vmatprep.subr.mxu0 0.0
    %448 = vmatpush1.msra.mxu0 0.0
    %449 = vmatprep.subr.mxu0 0.0
    %450 = vmatpush1.msra.mxu0 0.0
    %451 = vmatprep.subr.mxu0 0.0
    %452 = vmatpush1.msra.mxu0 0.0
    %453 = vmatprep.subr.mxu0 0.0
    %454 = vmatpush1.msra.mxu0 0.0
    %455 = vmatprep.subr.mxu0 0.0
    %456 = vmatpush1.msra.mxu0 0.0
    %457 = vmatprep.mubr.f32.mxu0 0.0
    %458 = vmatmul.mubr.f32.gmra.mrb[0].mxu0 %v318
    %v459 = vpop.f32.mrb[0].mxu0
    %v460 = vadd.f32 0.0, %v459
    %v461 = vpop.f32.mrb[0].mxu0
    %462 = vdwg.mxu0
    %v463 = vadd.f32 %v392, %v460
    %464 = vst.msk [vmem:[#allocation7] sm:$0xff] %vm209, %v463
    %v465 = vld [vmem:[#allocation9] sm:$0x1]
    %v466 = vsel %vm209, %v97, 0.0
    %v467 = vsel %vm209, %v98, 0.0
    %v468 = vadd.f32 %v466, %v467
    %v469 = vrot.slane %v468, 4
    %v470 = vadd.f32 %v468, %v469
    %v471 = vrot.slane %v470, 2
    %v472 = vadd.f32 %v470, %v471
    %v473 = vrot.slane %v472, 1
    %v474 = vadd.f32 %v472, %v473
    %v475 = vadd.f32 %v465, %v474
    %vm476 = vcmask 57344
    %477 = vst.msk [vmem:[#allocation9] sm:$0x1] %vm476, %v475
    %v478 = vld [vmem:[#allocation10] sm:$0x1]
    %v479 = vsel %vm209, %v99, 0.0
    %v480 = vsel %vm209, %v100, 0.0
    %v481 = vadd.f32 %v479, %v480
    %v482 = vrot.slane %v481, 4
    %v483 = vadd.f32 %v481, %v482
    %v484 = vrot.slane %v483, 2
    %v485 = vadd.f32 %v483, %v484
    %v486 = vrot.slane %v485, 1
    %v487 = vadd.f32 %v485, %v486
    %v488 = vadd.f32 %v478, %v487
    %489 = vst.msk [vmem:[#allocation10] sm:$0x1] %vm476, %v488
    // Predicated region
    $region14: #{tpu_custom_call.1} parent=1 // pred_check
      _
    $region15: #{tpu_custom_call.1} parent=1 // pred_check_branch
      %491 = sbr.rel (0) target = $region17
    $region16: #{tpu_custom_call.1} parent=1 // pred_region
      %s493 = ssub.s32 128, 128
      %494 = vsyncadd [#allocation3], %s493
      %s496 = sshll.u32 [#allocation2], 4
      %s497 = int_to_ptr.vmem [resolvable:$true] %s496
      %499 = dma.vmem_to_hbm [thread:$0]  %s497, 128, %s2, [#allocation3]
    $region17: #{tpu_custom_call.1} parent=1 // pred_fallthru
      _
    // Predicated region
    $region18: #{tpu_custom_call.1} parent=1 // pred_check
      _
    $region19: #{tpu_custom_call.1} parent=1 // pred_check_branch
      %501 = sbr.rel (0) target = $region21
    $region20: #{tpu_custom_call.1} parent=1 // pred_region
      %s503 = ssub.s32 128, 128
      %504 = vsyncadd [#allocation5], %s503
      %s506 = sshll.u32 [#allocation4], 4
      %s507 = int_to_ptr.vmem [resolvable:$true] %s506
      %509 = dma.vmem_to_hbm [thread:$0]  %s507, 128, %s3, [#allocation5]
    $region21: #{tpu_custom_call.1} parent=1 // pred_fallthru
      _
    // Predicated region
    $region22: #{tpu_custom_call.1} parent=1 // pred_check
      _
    $region23: #{tpu_custom_call.1} parent=1 // pred_check_branch
      %511 = sbr.rel (0) target = $region25
    $region24: #{tpu_custom_call.1} parent=1 // pred_region
      %s513 = ssub.s32 128, 128
      %514 = vsyncadd [#allocation5], %s513
      %s516 = sshll.u32 [#allocation6], 4
      %s517 = int_to_ptr.vmem [resolvable:$true] %s516
      %519 = dma.vmem_to_hbm [thread:$0]  %s517, 128, %s4, [#allocation5]
    $region25: #{tpu_custom_call.1} parent=1 // pred_fallthru
      _
    // Predicated region
    $region26: #{tpu_custom_call.1} parent=1 // pred_check
      _
    $region27: #{tpu_custom_call.1} parent=1 // pred_check_branch
      %521 = sbr.rel (0) target = $region29
    $region28: #{tpu_custom_call.1} parent=1 // pred_region
      %s523 = ssub.s32 128, 128
      %524 = vsyncadd [#allocation8], %s523
      %s526 = sshll.u32 [#allocation7], 4
      %s527 = int_to_ptr.vmem [resolvable:$true] %s526
      %529 = dma.vmem_to_hbm [thread:$0]  %s527, 128, %s5, [#allocation8]
    $region29: #{tpu_custom_call.1} parent=1 // pred_fallthru
      _
    // Predicated region
    $region30: #{tpu_custom_call.1} parent=1 // pred_check
      _
    $region31: #{tpu_custom_call.1} parent=1 // pred_check_branch
      %531 = sbr.rel (0) target = $region33
    $region32: #{tpu_custom_call.1} parent=1 // pred_region
      %s533 = ssub.s32 16, 16
      %534 = vsyncadd [#allocation8], %s533
      %s536 = sshll.u32 [#allocation9], 4
      %s537 = int_to_ptr.vmem [resolvable:$true] %s536
      %539 = dma.vmem_to_hbm [thread:$0]  %s537, 16, %s6, [#allocation8]
    $region33: #{tpu_custom_call.1} parent=1 // pred_fallthru
      _
    // Predicated region
    $region34: #{tpu_custom_call.1} parent=1 // pred_check
      _
    $region35: #{tpu_custom_call.1} parent=1 // pred_check_branch
      %541 = sbr.rel (0) target = $region37
    $region36: #{tpu_custom_call.1} parent=1 // pred_region
      %s543 = ssub.s32 16, 16
      %544 = vsyncadd [#allocation11], %s543
      %s546 = sshll.u32 [#allocation10], 4
      %s547 = int_to_ptr.vmem [resolvable:$true] %s546
      %549 = dma.vmem_to_hbm [thread:$0]  %s547, 16, %s7, [#allocation11]
    $region37: #{tpu_custom_call.1} parent=1 // pred_fallthru
      _
    // Predicated region
    $region38: #{tpu_custom_call.1} parent=1 // pred_check
      _
    $region39: #{tpu_custom_call.1} parent=1 // pred_check_branch
      %551 = sbr.rel (0) target = $region41
    $region40: #{tpu_custom_call.1} parent=1 // pred_region
      %552 = dma.done [#allocation3], 128
    $region41: #{tpu_custom_call.1} parent=1 // pred_fallthru
      _
    // Predicated region
    $region42: #{tpu_custom_call.1} parent=1 // pred_check
      _
    $region43: #{tpu_custom_call.1} parent=1 // pred_check_branch
      %554 = sbr.rel (0) target = $region45
    $region44: #{tpu_custom_call.1} parent=1 // pred_region
      %555 = dma.done [#allocation5], 128
    $region45: #{tpu_custom_call.1} parent=1 // pred_fallthru
      _
    // Predicated region
    $region46: #{tpu_custom_call.1} parent=1 // pred_check
      _
    $region47: #{tpu_custom_call.1} parent=1 // pred_check_branch
      %557 = sbr.rel (0) target = $region49
    $region48: #{tpu_custom_call.1} parent=1 // pred_region
      %558 = dma.done [#allocation5], 128
    $region49: #{tpu_custom_call.1} parent=1 // pred_fallthru
      _
    // Predicated region
    $region50: #{tpu_custom_call.1} parent=1 // pred_check
      _
    $region51: #{tpu_custom_call.1} parent=1 // pred_check_branch
      %560 = sbr.rel (0) target = $region53
    $region52: #{tpu_custom_call.1} parent=1 // pred_region
      %561 = dma.done [#allocation8], 128
    $region53: #{tpu_custom_call.1} parent=1 // pred_fallthru
      _
    // Predicated region
    $region54: #{tpu_custom_call.1} parent=1 // pred_check
      _
    $region55: #{tpu_custom_call.1} parent=1 // pred_check_branch
      %563 = sbr.rel (0) target = $region57
    $region56: #{tpu_custom_call.1} parent=1 // pred_region
      %564 = dma.done [#allocation8], 16
    $region57: #{tpu_custom_call.1} parent=1 // pred_fallthru
      _
    // Predicated region
    $region58: #{tpu_custom_call.1} parent=1 // pred_check
      _
    $region59: #{tpu_custom_call.1} parent=1 // pred_check_branch
      %566 = sbr.rel (0) target = $region61
    $region60: #{tpu_custom_call.1} parent=1 // pred_region
      %567 = dma.done [#allocation11], 16
    $region61: #{tpu_custom_call.1} parent=1 // pred_fallthru
      _
    %568 = vsyncpa [#allocation3], 1
    %569 = vsyncpa [#allocation5], 1
    %570 = vsyncpa [#allocation8], 1
    %571 = vsyncpa [#allocation11], 1

</llo_original>
